<compile_context>
chip_gen: v6e
topology: v6e:2x2x1
jax: 0.10.0
libtpu: 0.0.40
codegen_flags: <defaults>
</compile_context>

<pallas_src>
import jax
import jax.numpy as jnp
from jax.experimental import pallas as pl
from jax.experimental.pallas import tpu as pltpu


def _round_up(n, m):
    return ((n + m - 1) // m) * m


def _mlp_kernel(xt_ref, w1t_ref, b1_ref, w2t_ref, b2_ref, ot_ref):
    # All compute is lane-dense: batch on the lane axis.
    #   xt  : [D_in, TILE_B]   w1t : [H, D_in]   b1 : [H, 1]
    #   w2t : [OUT, H]         b2  : [OUT, 1]    ot : [OUT, TILE_B]
    h = jnp.dot(w1t_ref[...], xt_ref[...], preferred_element_type=jnp.float32)
    h = jnp.maximum(h + b1_ref[...], 0.0)                      # bias + ReLU in f32
    out = jnp.dot(w2t_ref[...], h.astype(w2t_ref.dtype),
                  preferred_element_type=jnp.float32)
    ot_ref[...] = (out + b2_ref[...]).astype(ot_ref.dtype)


def inv_dynamics_forward(x, w1, b1, w2, b2, *, tile_b=2048, use_bf16=False):
    """Forward pass of InvDynamicsNetwork via a single fused Pallas TPU kernel.

    Args:
      x:  [B, D_in] float32
      w1: [D_in, H] float32   (transpose of PyTorch hidden.weight)
      b1: [1, H]    float32
      w2: [H, 2]    float32   (transpose of PyTorch output.weight)
      b2: [1, 2]    float32
      tile_b:   batch tile size (rounded up to a multiple of 128 lanes)
      use_bf16: cast x / weights to bf16 for the matmuls (f32 accumulation)
    Returns:
      [B, 2] float32
    """
    B, d_in = x.shape
    H = w1.shape[1]
    out_dim = w2.shape[1]

    # Lane-dense batch tile: multiple of 128, no larger than the (padded) batch.
    tile_b = _round_up(max(1, tile_b), 128)
    tile_b = max(128, min(tile_b, _round_up(B, 128)))
    b_pad = _round_up(B, tile_b)
    grid = (pl.cdiv(b_pad, tile_b),)

    compute_dtype = jnp.bfloat16 if use_bf16 else x.dtype

    # Wrapper-side layout plumbing (pad + transpose so batch is on the lane axis).
    xt = jnp.pad(x, ((0, b_pad - B), (0, 0))).T.astype(compute_dtype)   # [D_in, B_pad]
    w1t = w1.T.astype(compute_dtype)                                    # [H, D_in]
    w2t = w2.T.astype(compute_dtype)                                    # [OUT, H]
    b1t = jnp.reshape(b1, (H, 1)).astype(jnp.float32)                   # [H, 1]
    b2t = jnp.reshape(b2, (out_dim, 1)).astype(jnp.float32)             # [OUT, 1]

    out_t = pl.pallas_call(
        _mlp_kernel,
        out_shape=jax.ShapeDtypeStruct((out_dim, b_pad), jnp.float32),
        grid=grid,
        in_specs=[
            # x tile marches along the batch (lane) axis.
            pl.BlockSpec((d_in, tile_b), lambda i: (0, i)),
            # Weights / biases: constant index map -> stay VMEM-resident, no re-DMA.
            pl.BlockSpec((H, d_in), lambda i: (0, 0)),
            pl.BlockSpec((H, 1), lambda i: (0, 0)),
            pl.BlockSpec((out_dim, H), lambda i: (0, 0)),
            pl.BlockSpec((out_dim, 1), lambda i: (0, 0)),
        ],
        out_specs=pl.BlockSpec((out_dim, tile_b), lambda i: (0, i)),
        compiler_params=pltpu.CompilerParams(
            dimension_semantics=("parallel",),
        ),
    )(xt, w1t, b1t, w2t, b2t)

    # Back to module layout [B, 2]; drop the padded rows.
    return out_t[:, :B].T


def init_params(key, input_size, hidden_size=8, output_size=2):
    """Deterministic init mimicking PyTorch nn.Linear default (U(-1/sqrt(fan_in), +))."""
    k1, k2, k3, k4 = jax.random.split(key, 4)
    bound1 = 1.0 / jnp.sqrt(jnp.float32(input_size))
    bound2 = 1.0 / jnp.sqrt(jnp.float32(hidden_size))
    w1 = jax.random.uniform(k1, (input_size, hidden_size), jnp.float32, -bound1, bound1)
    b1 = jax.random.uniform(k2, (1, hidden_size), jnp.float32, -bound1, bound1)
    w2 = jax.random.uniform(k3, (hidden_size, output_size), jnp.float32, -bound2, bound2)
    b2 = jax.random.uniform(k4, (1, output_size), jnp.float32, -bound2, bound2)
    return w1, b1, w2, b2


if __name__ == "__main__":
    key = jax.random.PRNGKey(0)
    k_x, k_p = jax.random.split(key)

    # CartPole BCO: "states" are (s, s') pairs -> input_size = 2 * 4 = 8.
    batch, input_size = 8, 8
    x = jax.random.normal(k_x, (batch, input_size), jnp.float32)
    w1, b1, w2, b2 = init_params(k_p, input_size)

    # Small demo batch (single grid step after padding to 128 lanes).
    out = jax.block_until_ready(inv_dynamics_forward(x, w1, b1, w2, b2))
    ref = jnp.maximum(x @ w1 + b1, 0.0) @ w2 + b2
    assert out.shape == (batch, 2)
    assert jnp.allclose(out, ref, atol=1e-5), "mismatch vs. reference (small batch)"

    # Ragged, multi-tile batch exercises the parallel grid + tail padding path.
    batch2 = 300
    x2 = jax.random.normal(jax.random.PRNGKey(1), (batch2, input_size), jnp.float32)
    out2 = jax.block_until_ready(
        inv_dynamics_forward(x2, w1, b1, w2, b2, tile_b=128))
    ref2 = jnp.maximum(x2 @ w1 + b1, 0.0) @ w2 + b2
    assert out2.shape == (batch2, 2)
    assert jnp.allclose(out2, ref2, atol=1e-5), "mismatch vs. reference (ragged batch)"

    # NOTE: at tiny demo batches the pallas_call launch dominates; the kernel's win
    # (fused single HBM pass over x at ~roofline) only shows at production batch
    # sizes — benchmark there with xprof trace minimums, not perf_counter.
    print("KERNEL_OK")
</pallas_src>

<mosaic_0001>
module attributes {stable_mosaic.version = 11 : i64} {
  func.func @_mlp_kernel(%arg0: i32, %arg1: memref<8x128xf32, #tpu.memory_space<vmem>>, %arg2: memref<8x8xf32, #tpu.memory_space<vmem>>, %arg3: memref<8x1xf32, #tpu.memory_space<vmem>>, %arg4: memref<2x8xf32, #tpu.memory_space<vmem>>, %arg5: memref<2x1xf32, #tpu.memory_space<vmem>>, %arg6: memref<2x128xf32, #tpu.memory_space<vmem>>) attributes {dimension_semantics = [#tpu.dimension_semantics<parallel>], iteration_bounds = array<i64: 1>, scalar_prefetch = 0 : i64, scratch_operands = 0 : i64, tpu.core_type = #tpu.core_type<tc>, window_params = [{transform_indices = @transform_0, window_bounds = array<i64: 8, 128>}, {pipeline_mode = #tpu.pipeline_mode<synchronous>, transform_indices = @transform_1, window_bounds = array<i64: 8, 8>}, {pipeline_mode = #tpu.pipeline_mode<synchronous>, transform_indices = @transform_2, window_bounds = array<i64: 8, 1>}, {pipeline_mode = #tpu.pipeline_mode<synchronous>, transform_indices = @transform_3, window_bounds = array<i64: 2, 8>}, {pipeline_mode = #tpu.pipeline_mode<synchronous>, transform_indices = @transform_4, window_bounds = array<i64: 2, 1>}, {transform_indices = @transform_5, window_bounds = array<i64: 2, 128>}]} {
    %c0 = arith.constant 0 : index
    %c0_0 = arith.constant 0 : index
    %0 = vector.load %arg2[%c0, %c0_0] : memref<8x8xf32, #tpu.memory_space<vmem>>, vector<8x8xf32>
    %c0_1 = arith.constant 0 : index
    %c0_2 = arith.constant 0 : index
    %1 = vector.load %arg1[%c0_1, %c0_2] : memref<8x128xf32, #tpu.memory_space<vmem>>, vector<8x128xf32>
    %cst = arith.constant dense<0.000000e+00> : vector<8x128xf32>
    %2 = tpu.matmul %0, %1, %cst {dimension_numbers = #tpu.dot_dimension_numbers<[1], [0], [0], [1], [0, 0, 1, 1], [], []>} : vector<8x8xf32>, vector<8x128xf32>, vector<8x128xf32> -> vector<8x128xf32>
    %c0_3 = arith.constant 0 : index
    %c0_4 = arith.constant 0 : index
    %3 = vector.load %arg3[%c0_3, %c0_4] : memref<8x1xf32, #tpu.memory_space<vmem>>, vector<8x1xf32>
    %4 = vector.broadcast %3 : vector<8x1xf32> to vector<8x128xf32>
    %5 = arith.addf %2, %4 : vector<8x128xf32>
    %cst_5 = arith.constant 0.000000e+00 : f32
    %6 = vector.broadcast %cst_5 : f32 to vector<8x128xf32>
    %7 = arith.maximumf %5, %6 : vector<8x128xf32>
    %c0_6 = arith.constant 0 : index
    %c0_7 = arith.constant 0 : index
    %8 = vector.load %arg4[%c0_6, %c0_7] : memref<2x8xf32, #tpu.memory_space<vmem>>, vector<2x8xf32>
    %cst_8 = arith.constant dense<0.000000e+00> : vector<2x128xf32>
    %9 = tpu.matmul %8, %7, %cst_8 {dimension_numbers = #tpu.dot_dimension_numbers<[1], [0], [0], [1], [0, 0, 1, 1], [], []>} : vector<2x8xf32>, vector<8x128xf32>, vector<2x128xf32> -> vector<2x128xf32>
    %c0_9 = arith.constant 0 : index
    %c0_10 = arith.constant 0 : index
    %10 = vector.load %arg5[%c0_9, %c0_10] : memref<2x1xf32, #tpu.memory_space<vmem>>, vector<2x1xf32>
    %11 = vector.broadcast %10 : vector<2x1xf32> to vector<2x128xf32>
    %12 = arith.addf %9, %11 : vector<2x128xf32>
    %c0_11 = arith.constant 0 : index
    %c0_12 = arith.constant 0 : index
    %13 = vector.load %arg6[%c0_11, %c0_12] : memref<2x128xf32, #tpu.memory_space<vmem>>, vector<2x128xf32>
    tpu.vector_store %arg6[%c0_11, %c0_12], %12 {strides = array<i32>} : memref<2x128xf32, #tpu.memory_space<vmem>>, vector<2x128xf32>,
    return
  }
  func.func @transform_0(%arg0: i32) -> (i32, i32) {
    %c0_i32 = arith.constant 0 : i32
    %c0_i32_0 = arith.constant 0 : i32
    return %c0_i32, %arg0 : i32, i32
  }
  func.func @transform_1(%arg0: i32) -> (i32, i32) {
    %c0_i32 = arith.constant 0 : i32
    %c0_i32_0 = arith.constant 0 : i32
    %c0_i32_1 = arith.constant 0 : i32
    return %c0_i32, %c0_i32_0 : i32, i32
  }
  func.func @transform_2(%arg0: i32) -> (i32, i32) {
    %c0_i32 = arith.constant 0 : i32
    %c0_i32_0 = arith.constant 0 : i32
    %c0_i32_1 = arith.constant 0 : i32
    return %c0_i32, %c0_i32_0 : i32, i32
  }
  func.func @transform_3(%arg0: i32) -> (i32, i32) {
    %c0_i32 = arith.constant 0 : i32
    %c0_i32_0 = arith.constant 0 : i32
    %c0_i32_1 = arith.constant 0 : i32
    return %c0_i32, %c0_i32_0 : i32, i32
  }
  func.func @transform_4(%arg0: i32) -> (i32, i32) {
    %c0_i32 = arith.constant 0 : i32
    %c0_i32_0 = arith.constant 0 : i32
    %c0_i32_1 = arith.constant 0 : i32
    return %c0_i32, %c0_i32_0 : i32, i32
  }
  func.func @transform_5(%arg0: i32) -> (i32, i32) {
    %c0_i32 = arith.constant 0 : i32
    %c0_i32_0 = arith.constant 0 : i32
    return %c0_i32, %arg0 : i32, i32
  }
}

</mosaic_0001>

<llo_original>
// kernel: tpu_custom_call.1
$region0: #{tpu_custom_call.1}
  #allocation0 [shape = 'u32[]', space=smem, size = 0x4, offset = 0x4, fixed_abs, tag = 'smem constant byte address 0x4 - core index']
  #allocation1 [shape = 'u32[144,128]{1,0:T(1,128)}', space=vmem, size = 0x12000, scoped, tag = 'internal scratch']
  %s0 = inlined_call_operand.vmem [shape: f32[8,128], index: 0, kind: input, shape index: {}]
  %s1 = inlined_call_operand.hbm [shape: f32[8,8], index: 1, kind: input, shape index: {}]
  %s2 = inlined_call_operand.vmem [shape: f32[8,1], index: 2, kind: input, shape index: {}]
  %s3 = inlined_call_operand.vmem [shape: f32[2,8], index: 3, kind: input, shape index: {}]
  %s4 = inlined_call_operand.vmem [shape: f32[2,1], index: 4, kind: input, shape index: {}]
  %s5 = inlined_call_operand.hbm [shape: f32[2,128], index: 5, kind: output, shape index: {}]
  %s6 = sld [smem:[#allocation0]]
  $region34: #{tpu_custom_call.1} parent=0
    _
  %s8 = ssub.s32 1, %s6
  %s9 = scalar_select 0, %s8, %s6
  $region1: #{tpu_custom_call.1} parent=0
    #allocation2 [shape = 'u8[4096]{0}', space=vmem, size = 0x1000, scoped, tag = 'input window, operand 1, single buffered']
    #allocation3 [shape = 's32[1]{0}', space=sflag, size = 0x4, scoped, tag = 'scoped memory for tpu_custom_call.1']
    #allocation4 [shape = 's32[1]{0}', space=sflag, size = 0x4, scoped, tag = 'scoped memory for tpu_custom_call.1']
    #allocation5 [shape = 'u8[1024]{0}', space=vmem, size = 0x400, scoped, tag = 'output window, operand 0, single buffered']
    %10 = vsyncpa [#allocation3], 0
    %11 = vsyncpa [#allocation4], 0
    // Predicated region
    $region2: #{tpu_custom_call.1} parent=1 // pred_check
      _
    $region3: #{tpu_custom_call.1} parent=1 // pred_check_branch
      %13 = sbr.rel (0) target = $region5
    $region4: #{tpu_custom_call.1} parent=1 // pred_region
      _
    $region5: #{tpu_custom_call.1} parent=1 // pred_fallthru
      _
    // Predicated region
    $region6: #{tpu_custom_call.1} parent=1 // pred_check
      _
    $region7: #{tpu_custom_call.1} parent=1 // pred_check_branch
      %15 = sbr.rel (0) target = $region9
    $region8: #{tpu_custom_call.1} parent=1 // pred_region
      %s17 = ssub.s32 128, 128
      %18 = vsyncadd [#allocation3], %s17
      %s20 = sshll.u32 [#allocation2], 4
      %s21 = int_to_ptr.vmem [resolvable:$true] %s20
      %23 = dma.hbm_to_vmem [thread:$0]  %s1, 128, %s21, [#allocation3]
    $region9: #{tpu_custom_call.1} parent=1 // pred_fallthru
      _
    // Predicated region
    $region10: #{tpu_custom_call.1} parent=1 // pred_check
      _
    $region11: #{tpu_custom_call.1} parent=1 // pred_check_branch
      %25 = sbr.rel (0) target = $region13
    $region12: #{tpu_custom_call.1} parent=1 // pred_region
      _
    $region13: #{tpu_custom_call.1} parent=1 // pred_fallthru
      _
    // Predicated region
    $region14: #{tpu_custom_call.1} parent=1 // pred_check
      _
    $region15: #{tpu_custom_call.1} parent=1 // pred_check_branch
      %27 = sbr.rel (0) target = $region17
    $region16: #{tpu_custom_call.1} parent=1 // pred_region
      _
    $region17: #{tpu_custom_call.1} parent=1 // pred_fallthru
      _
    // Predicated region
    $region18: #{tpu_custom_call.1} parent=1 // pred_check
      _
    $region19: #{tpu_custom_call.1} parent=1 // pred_check_branch
      %29 = sbr.rel (0) target = $region21
    $region20: #{tpu_custom_call.1} parent=1 // pred_region
      _
    $region21: #{tpu_custom_call.1} parent=1 // pred_fallthru
      _
    // Predicated region
    $region22: #{tpu_custom_call.1} parent=1 // pred_check
      _
    $region23: #{tpu_custom_call.1} parent=1 // pred_check_branch
      %31 = sbr.rel (0) target = $region25
    $region24: #{tpu_custom_call.1} parent=1 // pred_region
      %32 = dma.done [#allocation3], 128
    $region25: #{tpu_custom_call.1} parent=1 // pred_fallthru
      _
    %v33 = vld [vmem:[#allocation2] sm:$0xff]
    %v34 = vld [vmem:[%s0] sm:$0xff]
    %v35 = vld [vmem:[%s2] sm:$0xff]
    %37 = vset.pattern.permute.xlu0 0
    %38 = vperm.xlu0 %37, %v35
    %v39 = vpop.permute.xlu0 %38
    %vm41 = vcmask 64512
    %v43 = vsel %vm41, %v33, 0
    %45 = vmatprep.subr.mxu0 0.0
    %46 = vmatpush1.msra.mxu0 0.0
    %47 = vmatprep.subr.mxu0 0.0
    %48 = vmatpush1.msra.mxu0 0.0
    %49 = vmatprep.subr.mxu0 0.0
    %50 = vmatpush1.msra.mxu0 0.0
    %51 = vmatprep.subr.mxu0 0.0
    %52 = vmatpush1.msra.mxu0 0.0
    %53 = vmatprep.subr.mxu0 0.0
    %54 = vmatpush1.msra.mxu0 0.0
    %55 = vmatprep.subr.mxu0 0.0
    %56 = vmatpush1.msra.mxu0 0.0
    %57 = vmatprep.subr.mxu0 0.0
    %58 = vmatpush1.msra.mxu0 0.0
    %59 = vmatprep.subr.mxu0 0.0
    %60 = vmatpush1.msra.mxu0 0.0
    %61 = vmatprep.subr.mxu0 0.0
    %62 = vmatpush1.msra.mxu0 0.0
    %63 = vmatprep.subr.mxu0 0.0
    %64 = vmatpush1.msra.mxu0 0.0
    %65 = vmatprep.subr.mxu0 0.0
    %66 = vmatpush1.msra.mxu0 0.0
    %67 = vmatprep.subr.mxu0 0.0
    %68 = vmatpush1.msra.mxu0 0.0
    %69 = vmatprep.subr.mxu0 0.0
    %70 = vmatpush1.msra.mxu0 0.0
    %71 = vmatprep.subr.mxu0 0.0
    %72 = vmatpush1.msra.mxu0 0.0
    %73 = vmatprep.subr.mxu0 0.0
    %74 = vmatpush1.msra.mxu0 0.0
    %75 = vmatprep.subr.mxu0 0.0
    %76 = vmatpush1.msra.mxu0 %v34
    %77 = vmatprep.subr.mxu0 0.0
    %78 = vmatpush2.msra.mxu0 0.0
    %79 = vmatprep.subr.mxu0 0.0
    %80 = vmatpush2.msra.mxu0 0.0
    %81 = vmatprep.subr.mxu0 0.0
    %82 = vmatpush2.msra.mxu0 0.0
    %83 = vmatprep.subr.mxu0 0.0
    %84 = vmatpush2.msra.mxu0 0.0
    %85 = vmatprep.subr.mxu0 0.0
    %86 = vmatpush2.msra.mxu0 0.0
    %87 = vmatprep.subr.mxu0 0.0
    %88 = vmatpush2.msra.mxu0 0.0
    %89 = vmatprep.subr.mxu0 0.0
    %90 = vmatpush2.msra.mxu0 0.0
    %91 = vmatprep.subr.mxu0 0.0
    %92 = vmatpush2.msra.mxu0 0.0
    %93 = vmatprep.subr.mxu0 0.0
    %94 = vmatpush2.msra.mxu0 0.0
    %95 = vmatprep.subr.mxu0 0.0
    %96 = vmatpush2.msra.mxu0 0.0
    %97 = vmatprep.subr.mxu0 0.0
    %98 = vmatpush2.msra.mxu0 0.0
    %99 = vmatprep.subr.mxu0 0.0
    %100 = vmatpush2.msra.mxu0 0.0
    %101 = vmatprep.subr.mxu0 0.0
    %102 = vmatpush2.msra.mxu0 0.0
    %103 = vmatprep.subr.mxu0 0.0
    %104 = vmatpush2.msra.mxu0 0.0
    %105 = vmatprep.subr.mxu0 0.0
    %106 = vmatpush2.msra.mxu0 0.0
    %107 = vmatprep.subr.mxu0 0.0
    %108 = vmatpush2.msra.mxu0 0.0
    %109 = vmatprep.mubr.f32.mxu0 0.0
    %110 = vmatmul.mubr.f32.gmra.mxu0 %v43
    %v111 = vpop.f32.mrf.mxu0
    %v112 = vadd.f32 %v39, %v111
    %v113 = vpop.f32.mrf.mxu0
    %114 = vdwg.mxu0
    %v115 = vmax.f32 %v112, 0.0
    %v116 = vld [vmem:[%s3] sm:$0x3]
    %v117 = vld [vmem:[%s4] sm:$0x3]
    %119 = vset.pattern.permute.xlu0 0
    %120 = vperm.xlu0 %119, %v117
    %v121 = vpop.permute.xlu0 %120
    %v124 = vsel %vm41, %v116, 0
    %126 = vmatprep.subr.mxu0 0.0
    %127 = vmatpush1.msra.mxu0 0.0
    %128 = vmatprep.subr.mxu0 0.0
    %129 = vmatpush1.msra.mxu0 0.0
    %130 = vmatprep.subr.mxu0 0.0
    %131 = vmatpush1.msra.mxu0 0.0
    %132 = vmatprep.subr.mxu0 0.0
    %133 = vmatpush1.msra.mxu0 0.0
    %134 = vmatprep.subr.mxu0 0.0
    %135 = vmatpush1.msra.mxu0 0.0
    %136 = vmatprep.subr.mxu0 0.0
    %137 = vmatpush1.msra.mxu0 0.0
    %138 = vmatprep.subr.mxu0 0.0
    %139 = vmatpush1.msra.mxu0 0.0
    %140 = vmatprep.subr.mxu0 0.0
    %141 = vmatpush1.msra.mxu0 0.0
    %142 = vmatprep.subr.mxu0 0.0
    %143 = vmatpush1.msra.mxu0 0.0
    %144 = vmatprep.subr.mxu0 0.0
    %145 = vmatpush1.msra.mxu0 0.0
    %146 = vmatprep.subr.mxu0 0.0
    %147 = vmatpush1.msra.mxu0 0.0
    %148 = vmatprep.subr.mxu0 0.0
    %149 = vmatpush1.msra.mxu0 0.0
    %150 = vmatprep.subr.mxu0 0.0
    %151 = vmatpush1.msra.mxu0 0.0
    %152 = vmatprep.subr.mxu0 0.0
    %153 = vmatpush1.msra.mxu0 0.0
    %154 = vmatprep.subr.mxu0 0.0
    %155 = vmatpush1.msra.mxu0 0.0
    %156 = vmatprep.subr.mxu0 0.0
    %157 = vmatpush1.msra.mxu0 %v115
    %158 = vmatprep.subr.mxu0 0.0
    %159 = vmatpush2.msra.mxu0 0.0
    %160 = vmatprep.subr.mxu0 0.0
    %161 = vmatpush2.msra.mxu0 0.0
    %162 = vmatprep.subr.mxu0 0.0
    %163 = vmatpush2.msra.mxu0 0.0
    %164 = vmatprep.subr.mxu0 0.0
    %165 = vmatpush2.msra.mxu0 0.0
    %166 = vmatprep.subr.mxu0 0.0
    %167 = vmatpush2.msra.mxu0 0.0
    %168 = vmatprep.subr.mxu0 0.0
    %169 = vmatpush2.msra.mxu0 0.0
    %170 = vmatprep.subr.mxu0 0.0
    %171 = vmatpush2.msra.mxu0 0.0
    %172 = vmatprep.subr.mxu0 0.0
    %173 = vmatpush2.msra.mxu0 0.0
    %174 = vmatprep.subr.mxu0 0.0
    %175 = vmatpush2.msra.mxu0 0.0
    %176 = vmatprep.subr.mxu0 0.0
    %177 = vmatpush2.msra.mxu0 0.0
    %178 = vmatprep.subr.mxu0 0.0
    %179 = vmatpush2.msra.mxu0 0.0
    %180 = vmatprep.subr.mxu0 0.0
    %181 = vmatpush2.msra.mxu0 0.0
    %182 = vmatprep.subr.mxu0 0.0
    %183 = vmatpush2.msra.mxu0 0.0
    %184 = vmatprep.subr.mxu0 0.0
    %185 = vmatpush2.msra.mxu0 0.0
    %186 = vmatprep.subr.mxu0 0.0
    %187 = vmatpush2.msra.mxu0 0.0
    %188 = vmatprep.subr.mxu0 0.0
    %189 = vmatpush2.msra.mxu0 0.0
    %190 = vmatprep.mubr.f32.mxu0 0.0
    %191 = vmatmul.mubr.f32.gmra.mxu0 %v124
    %v192 = vpop.f32.mrf.mxu0
    %v193 = vadd.f32 %v121, %v192
    %v194 = vpop.f32.mrf.mxu0
    %195 = vdwg.mxu0
    %196 = vst [vmem:[#allocation5] sm:$0x3] %v193
    // Predicated region
    $region26: #{tpu_custom_call.1} parent=1 // pred_check
      _
    $region27: #{tpu_custom_call.1} parent=1 // pred_check_branch
      %198 = sbr.rel (0) target = $region29
    $region28: #{tpu_custom_call.1} parent=1 // pred_region
      %s200 = ssub.s32 32, 32
      %201 = vsyncadd [#allocation4], %s200
      %s203 = sshll.u32 [#allocation5], 4
      %s204 = int_to_ptr.vmem [resolvable:$true] %s203
      %206 = dma.vmem_to_hbm [thread:$0]  %s204, 32, %s5, [#allocation4]
    $region29: #{tpu_custom_call.1} parent=1 // pred_fallthru
      _
    // Predicated region
    $region30: #{tpu_custom_call.1} parent=1 // pred_check
      _
    $region31: #{tpu_custom_call.1} parent=1 // pred_check_branch
      %208 = sbr.rel (0) target = $region33
    $region32: #{tpu_custom_call.1} parent=1 // pred_region
      %209 = dma.done [#allocation4], 32
    $region33: #{tpu_custom_call.1} parent=1 // pred_fallthru
      _
    %210 = vsyncpa [#allocation3], 1
    %211 = vsyncpa [#allocation4], 1

</llo_original>
